<compile_context>
chip_gen: v6e
topology: v6e:2x2x1
jax: 0.10.0
libtpu: 0.0.40
codegen_flags: <defaults>
</compile_context>

<pallas_src>
import functools

import jax
import jax.numpy as jnp
from jax.experimental import pallas as pl
from jax.experimental.pallas import tpu as pltpu


def _round_up(n: int, m: int) -> int:
    return ((n + m - 1) // m) * m


def _choose_tile(batch: int, tile_batch: int) -> int:
    """Pick a batch tile: full-dim block for tiny B, 128-aligned otherwise."""
    if batch <= 128:
        return batch                       # block == full array dim: always legal
    tb = min(_round_up(max(tile_batch, 128), 128), _round_up(batch, 128))
    # Prefer >= 2 grid steps so "parallel" semantics can use both v7x TCs.
    if pl.cdiv(batch, tb) < 2:
        tb = max(128, _round_up(pl.cdiv(batch, 2), 128))
    return tb


def _vmem_limit_bytes(tb: int, f: int, h: int, c: int, mm_bytes: int) -> int:
    """Rough double-buffered footprint, clamped to [32 MiB, 48 MiB]."""
    x_b = 2 * tb * f * mm_bytes                               # streamed x tiles
    w_b = 2 * ((f * h + h * c) * mm_bytes + (h + c) * 4)      # resident weights/biases
    o_b = 2 * (2 * tb * c + tb) * 4                           # logits + pred + row loss
    est = x_b + w_b + o_b
    return int(min(max(2 * est + (8 << 20), 32 << 20), 48 << 20))


def _forward_tile(x, w1t, b1, w2t, b2):
    """Per-tile math: lin1 -> relu -> lin2 -> numerically stable softmax.

    Matmuls run in the operands' dtype (f32 or bf16) with f32 accumulation;
    all elementwise math is f32.
    """
    h = jnp.dot(x, w1t, preferred_element_type=jnp.float32) + b1        # (TB, H) f32
    h = jnp.maximum(h, 0.0)
    logits = jnp.dot(h.astype(w2t.dtype), w2t,
                     preferred_element_type=jnp.float32) + b2           # (TB, C) f32
    m = jnp.max(logits, axis=-1, keepdims=True)
    e = jnp.exp(logits - m)
    s = jnp.sum(e, axis=-1, keepdims=True)
    pred = e * pl.reciprocal(s, approx=True)                            # EUP vrcp
    return logits, pred, m, s


def _mcc_infer_kernel(x_ref, w1_ref, b1_ref, w2_ref, b2_ref,
                      logits_ref, pred_ref):
    logits, pred, _, _ = _forward_tile(
        x_ref[...], w1_ref[...], b1_ref[...], w2_ref[...], b2_ref[...])
    logits_ref[...] = logits.astype(logits_ref.dtype)
    pred_ref[...] = pred.astype(pred_ref.dtype)


def _mcc_train_kernel(x_ref, w1_ref, b1_ref, w2_ref, b2_ref, y_ref,
                      logits_ref, pred_ref, loss_ref, *, true_batch):
    logits, pred, m, s = _forward_tile(
        x_ref[...], w1_ref[...], b1_ref[...], w2_ref[...], b2_ref[...])
    logits_ref[...] = logits.astype(logits_ref.dtype)
    pred_ref[...] = pred.astype(pred_ref.dtype)

    tb, c = logits.shape
    lse = m + jnp.log(s)                                                # (TB, 1) logsumexp
    cls_ids = jax.lax.broadcasted_iota(jnp.int32, (tb, c), 1)
    onehot = (cls_ids == y_ref[...]).astype(jnp.float32)                # y_ref: (TB, 1) int32
    correct = jnp.sum(logits * onehot, axis=-1, keepdims=True)          # (TB, 1)

    # Mask rows past the true batch (partial last tile reads garbage); use
    # jnp.where so a NaN in a garbage row can never poison the host-side sum.
    row = jax.lax.broadcasted_iota(jnp.int32, (tb, 1), 0) + pl.program_id(0) * tb
    loss_ref[...] = jnp.where(row < true_batch, lse - correct, 0.0).astype(loss_ref.dtype)


def multi_class_classification_forward(x, params, y=None, *,
                                       tile_batch=1024,
                                       matmul_dtype=jnp.bfloat16):
    """Pallas forward. x: (B, n_features) f32; y: optional (B,) int32 class ids."""
    w1, b1, w2, b2 = params["w1"], params["b1"], params["w2"], params["b2"]
    B, F = x.shape
    H = w1.shape[0]
    C = w2.shape[0]
    mm_dtype = jnp.dtype(matmul_dtype)

    # Host-side layout plumbing (once): transpose + cast so the kernel never does it.
    w1t = jnp.asarray(w1, jnp.float32).T.astype(mm_dtype)    # (F, H)
    w2t = jnp.asarray(w2, jnp.float32).T.astype(mm_dtype)    # (H, C)
    b1r = jnp.asarray(b1, jnp.float32).reshape(1, H)
    b2r = jnp.asarray(b2, jnp.float32).reshape(1, C)
    x_mm = x if x.dtype == mm_dtype else x.astype(mm_dtype)  # ideally x is already bf16 upstream

    TB = _choose_tile(B, tile_batch)
    num_tiles = pl.cdiv(B, TB)           # no host-side padding: partial last tile

    def row_spec(shape):
        return pl.BlockSpec(shape, lambda i: (i, 0))

    def const_spec(shape):
        return pl.BlockSpec(shape, lambda i: (0, 0))

    common_in_specs = [
        row_spec((TB, F)),      # x tile (streamed)
        const_spec((F, H)),     # w1^T (resident)
        const_spec((1, H)),     # b1
        const_spec((H, C)),     # w2^T
        const_spec((1, C)),     # b2
    ]
    compiler_params = pltpu.CompilerParams(
        dimension_semantics=("parallel",),
        vmem_limit_bytes=_vmem_limit_bytes(TB, F, H, C, mm_dtype.itemsize),
    )

    if y is None:
        # Inference path: no labels, no cross-entropy work at all.
        logits, pred = pl.pallas_call(
            _mcc_infer_kernel,
            grid=(num_tiles,),
            out_shape=(
                jax.ShapeDtypeStruct((B, C), jnp.float32),
                jax.ShapeDtypeStruct((B, C), jnp.float32),
            ),
            in_specs=common_in_specs,
            out_specs=(row_spec((TB, C)), row_spec((TB, C))),
            compiler_params=compiler_params,
        )(x_mm, w1t, b1r, w2t, b2r)
        return {"logits": logits, "pred": pred}

    y_p = jnp.asarray(y).astype(jnp.int32).reshape(B, 1)

    kernel = functools.partial(_mcc_train_kernel, true_batch=B)
    logits, pred, row_loss = pl.pallas_call(
        kernel,
        grid=(num_tiles,),
        out_shape=(
            jax.ShapeDtypeStruct((B, C), jnp.float32),   # logits
            jax.ShapeDtypeStruct((B, C), jnp.float32),   # pred
            jax.ShapeDtypeStruct((B, 1), jnp.float32),   # per-row loss (masked)
        ),
        in_specs=common_in_specs + [row_spec((TB, 1))],
        out_specs=(row_spec((TB, C)), row_spec((TB, C)), row_spec((TB, 1))),
        compiler_params=compiler_params,
    )(x_mm, w1t, b1r, w2t, b2r, y_p)

    loss = jnp.sum(row_loss) / B   # CrossEntropyLoss 'mean' over the true batch
    return {"logits": logits, "pred": pred, "loss": loss}


def init_params(key, n_features, n_hidden, n_classes=5):
    """Deterministic init matching nn.Linear's U(-1/sqrt(fan_in), 1/sqrt(fan_in))."""
    k1, k2, k3, k4 = jax.random.split(key, 4)
    lim1 = 1.0 / jnp.sqrt(n_features)
    lim2 = 1.0 / jnp.sqrt(n_hidden)
    return {
        "w1": jax.random.uniform(k1, (n_hidden, n_features), jnp.float32, -lim1, lim1),
        "b1": jax.random.uniform(k2, (n_hidden,), jnp.float32, -lim1, lim1),
        "w2": jax.random.uniform(k3, (n_classes, n_hidden), jnp.float32, -lim2, lim2),
        "b2": jax.random.uniform(k4, (n_classes,), jnp.float32, -lim2, lim2),
    }


def _reference(x, params, y):
    h = jnp.maximum(x @ params["w1"].T + params["b1"], 0.0)
    logits = h @ params["w2"].T + params["b2"]
    pred = jax.nn.softmax(logits, axis=-1)
    loss = jnp.mean(jax.nn.logsumexp(logits, axis=-1)
                    - jnp.take_along_axis(logits, y[:, None], axis=-1)[:, 0])
    return logits, pred, loss


if __name__ == "__main__":
    # Case 1: tiny batch (single full-dim tile, B not a multiple of 8).
    B, n_features, n_hidden, n_classes = 12, 32, 64, 5

    key = jax.random.PRNGKey(0)
    kx, ky, kp, kx2, ky2 = jax.random.split(key, 5)
    x = jax.random.normal(kx, (B, n_features), jnp.float32)
    y = jax.random.randint(ky, (B,), 0, n_classes, jnp.int32)
    params = init_params(kp, n_features, n_hidden, n_classes)

    logits_ref, pred_ref, loss_ref = _reference(x, params, y)

    # f32 matmul path: tight tolerances.
    out = multi_class_classification_forward(x, params, y, matmul_dtype=jnp.float32)
    jax.block_until_ready(out)
    assert out["logits"].shape == (B, n_classes)
    assert jnp.allclose(out["logits"], logits_ref, atol=1e-4, rtol=1e-4)
    assert jnp.allclose(out["pred"], pred_ref, atol=1e-3, rtol=1e-3)
    assert jnp.allclose(out["loss"], loss_ref, atol=1e-5, rtol=1e-4)

    # Inference path (no labels, no loss work).
    out_infer = multi_class_classification_forward(x, params, None, matmul_dtype=jnp.float32)
    jax.block_until_ready(out_infer)
    assert "loss" not in out_infer
    assert jnp.allclose(out_infer["logits"], logits_ref, atol=1e-4, rtol=1e-4)
    assert jnp.allclose(out_infer["pred"], pred_ref, atol=1e-3, rtol=1e-3)

    # bf16 matmul path (default, bandwidth/MXU-optimized): loose tolerances.
    out_bf16 = multi_class_classification_forward(x, params, y)
    jax.block_until_ready(out_bf16)
    assert jnp.allclose(out_bf16["logits"], logits_ref, atol=5e-2, rtol=5e-2)
    assert jnp.allclose(out_bf16["pred"], pred_ref, atol=2e-2, rtol=2e-2)
    assert jnp.allclose(out_bf16["loss"], loss_ref, atol=5e-2, rtol=5e-2)

    # Case 2: multi-tile grid with a partial last tile (300 = 2*128 + 44),
    # exercising the no-pad cdiv grid and the valid-row loss masking.
    B2 = 300
    x2 = jax.random.normal(kx2, (B2, n_features), jnp.float32)
    y2 = jax.random.randint(ky2, (B2,), 0, n_classes, jnp.int32)
    logits_ref2, pred_ref2, loss_ref2 = _reference(x2, params, y2)

    out2 = multi_class_classification_forward(x2, params, y2,
                                              tile_batch=128, matmul_dtype=jnp.float32)
    jax.block_until_ready(out2)
    assert out2["logits"].shape == (B2, n_classes)
    assert jnp.allclose(out2["logits"], logits_ref2, atol=1e-4, rtol=1e-4)
    assert jnp.allclose(out2["pred"], pred_ref2, atol=1e-3, rtol=1e-3)
    assert jnp.allclose(out2["loss"], loss_ref2, atol=1e-4, rtol=1e-4)

    print("KERNEL_OK")
</pallas_src>

<mosaic_0001>
module attributes {stable_mosaic.version = 11 : i64} {
  func.func @_mcc_train_kernel(%arg0: i32, %arg1: memref<12x32xf32, #tpu.memory_space<vmem>>, %arg2: memref<32x64xf32, #tpu.memory_space<vmem>>, %arg3: memref<1x64xf32, #tpu.memory_space<vmem>>, %arg4: memref<64x5xf32, #tpu.memory_space<vmem>>, %arg5: memref<1x5xf32, #tpu.memory_space<vmem>>, %arg6: memref<12x1xi32, #tpu.memory_space<vmem>>, %arg7: memref<12x5xf32, #tpu.memory_space<vmem>>, %arg8: memref<12x5xf32, #tpu.memory_space<vmem>>, %arg9: memref<12x1xf32, #tpu.memory_space<vmem>>) attributes {dimension_semantics = [#tpu.dimension_semantics<parallel>], iteration_bounds = array<i64: 1>, scalar_prefetch = 0 : i64, scratch_operands = 0 : i64, tpu.core_type = #tpu.core_type<tc>, window_params = [{transform_indices = @transform_0, window_bounds = array<i64: 12, 32>}, {pipeline_mode = #tpu.pipeline_mode<synchronous>, transform_indices = @transform_1, window_bounds = array<i64: 32, 64>}, {pipeline_mode = #tpu.pipeline_mode<synchronous>, transform_indices = @transform_2, window_bounds = array<i64: 1, 64>}, {pipeline_mode = #tpu.pipeline_mode<synchronous>, transform_indices = @transform_3, window_bounds = array<i64: 64, 5>}, {pipeline_mode = #tpu.pipeline_mode<synchronous>, transform_indices = @transform_4, window_bounds = array<i64: 1, 5>}, {transform_indices = @transform_5, window_bounds = array<i64: 12, 1>}, {transform_indices = @transform_6, window_bounds = array<i64: 12, 5>}, {transform_indices = @transform_7, window_bounds = array<i64: 12, 5>}, {transform_indices = @transform_8, window_bounds = array<i64: 12, 1>}]} {
    %c0 = arith.constant 0 : index
    %c0_0 = arith.constant 0 : index
    %0 = vector.load %arg1[%c0, %c0_0] : memref<12x32xf32, #tpu.memory_space<vmem>>, vector<12x32xf32>
    %c0_1 = arith.constant 0 : index
    %c0_2 = arith.constant 0 : index
    %1 = vector.load %arg2[%c0_1, %c0_2] : memref<32x64xf32, #tpu.memory_space<vmem>>, vector<32x64xf32>
    %c0_3 = arith.constant 0 : index
    %c0_4 = arith.constant 0 : index
    %2 = vector.load %arg3[%c0_3, %c0_4] : memref<1x64xf32, #tpu.memory_space<vmem>>, vector<1x64xf32>
    %c0_5 = arith.constant 0 : index
    %c0_6 = arith.constant 0 : index
    %3 = vector.load %arg4[%c0_5, %c0_6] : memref<64x5xf32, #tpu.memory_space<vmem>>, vector<64x5xf32>
    %c0_7 = arith.constant 0 : index
    %c0_8 = arith.constant 0 : index
    %4 = vector.load %arg5[%c0_7, %c0_8] : memref<1x5xf32, #tpu.memory_space<vmem>>, vector<1x5xf32>
    %cst = arith.constant dense<0.000000e+00> : vector<12x64xf32>
    %5 = tpu.matmul %0, %1, %cst {dimension_numbers = #tpu.dot_dimension_numbers<[1], [0], [0], [1], [0, 0, 1, 1], [], []>} : vector<12x32xf32>, vector<32x64xf32>, vector<12x64xf32> -> vector<12x64xf32>
    %6 = vector.broadcast %2 : vector<1x64xf32> to vector<12x64xf32>
    %7 = arith.addf %5, %6 : vector<12x64xf32>
    %cst_9 = arith.constant 0.000000e+00 : f32
    %8 = vector.broadcast %cst_9 : f32 to vector<12x64xf32>
    %9 = arith.maximumf %7, %8 : vector<12x64xf32>
    %cst_10 = arith.constant dense<0.000000e+00> : vector<12x5xf32>
    %10 = tpu.matmul %9, %3, %cst_10 {dimension_numbers = #tpu.dot_dimension_numbers<[1], [0], [0], [1], [0, 0, 1, 1], [], []>} : vector<12x64xf32>, vector<64x5xf32>, vector<12x5xf32> -> vector<12x5xf32>
    %11 = vector.broadcast %4 : vector<1x5xf32> to vector<12x5xf32>
    %12 = arith.addf %10, %11 : vector<12x5xf32>
    %cst_11 = arith.constant dense<0xFF800000> : vector<12xf32>
    %13 = vector.multi_reduction <maximumf>, %12, %cst_11 [1] : vector<12x5xf32> to vector<12xf32>
    %14 = vector.shape_cast %13 : vector<12xf32> to vector<12x1xf32>
    %15 = vector.broadcast %14 : vector<12x1xf32> to vector<12x5xf32>
    %16 = arith.subf %12, %15 : vector<12x5xf32>
    %17 = math.exp %16 : vector<12x5xf32>
    %cst_12 = arith.constant dense<0.000000e+00> : vector<12xf32>
    %18 = vector.multi_reduction <add>, %17, %cst_12 [1] : vector<12x5xf32> to vector<12xf32>
    %19 = vector.shape_cast %18 : vector<12xf32> to vector<12x1xf32>
    %20 = tpu.reciprocal %19 {approx = true} : vector<12x1xf32> -> vector<12x1xf32>
    %21 = vector.broadcast %20 : vector<12x1xf32> to vector<12x5xf32>
    %22 = arith.mulf %17, %21 : vector<12x5xf32>
    %c0_13 = arith.constant 0 : index
    %c0_14 = arith.constant 0 : index
    %23 = vector.load %arg7[%c0_13, %c0_14] : memref<12x5xf32, #tpu.memory_space<vmem>>, vector<12x5xf32>
    tpu.vector_store %arg7[%c0_13, %c0_14], %12 {strides = array<i32>} : memref<12x5xf32, #tpu.memory_space<vmem>>, vector<12x5xf32>,
    %c0_15 = arith.constant 0 : index
    %c0_16 = arith.constant 0 : index
    %24 = vector.load %arg8[%c0_15, %c0_16] : memref<12x5xf32, #tpu.memory_space<vmem>>, vector<12x5xf32>
    tpu.vector_store %arg8[%c0_15, %c0_16], %22 {strides = array<i32>} : memref<12x5xf32, #tpu.memory_space<vmem>>, vector<12x5xf32>,
    %25 = math.log %19 : vector<12x1xf32>
    %26 = arith.addf %14, %25 : vector<12x1xf32>
    %27 = tpu.iota {dimensions = array<i32: 1>} : vector<12x5xi32>
    %c0_17 = arith.constant 0 : index
    %c0_18 = arith.constant 0 : index
    %28 = vector.load %arg6[%c0_17, %c0_18] : memref<12x1xi32, #tpu.memory_space<vmem>>, vector<12x1xi32>
    %29 = vector.broadcast %28 : vector<12x1xi32> to vector<12x5xi32>
    %30 = arith.cmpi eq, %27, %29 : vector<12x5xi32>
    %31 = arith.extui %30 : vector<12x5xi1> to vector<12x5xi32>
    %32 = arith.sitofp %31 : vector<12x5xi32> to vector<12x5xf32>
    %33 = arith.mulf %12, %32 : vector<12x5xf32>
    %cst_19 = arith.constant dense<0.000000e+00> : vector<12xf32>
    %34 = vector.multi_reduction <add>, %33, %cst_19 [1] : vector<12x5xf32> to vector<12xf32>
    %35 = vector.shape_cast %34 : vector<12xf32> to vector<12x1xf32>
    %36 = tpu.iota {dimensions = array<i32: 0>} : vector<12x1xi32>
    %c12_i32 = arith.constant 12 : i32
    %37 = arith.muli %arg0, %c12_i32 : i32
    %38 = vector.broadcast %37 : i32 to vector<12x1xi32>
    %39 = arith.addi %36, %38 : vector<12x1xi32>
    %c12_i32_20 = arith.constant 12 : i32
    %40 = vector.broadcast %c12_i32_20 : i32 to vector<12x1xi32>
    %41 = arith.cmpi slt, %39, %40 : vector<12x1xi32>
    %42 = arith.subf %26, %35 : vector<12x1xf32>
    %cst_21 = arith.constant 0.000000e+00 : f32
    %43 = vector.broadcast %cst_21 : f32 to vector<12x1xf32>
    %44 = arith.select %41, %42, %43 : vector<12x1xi1>, vector<12x1xf32>
    %c0_22 = arith.constant 0 : index
    %c0_23 = arith.constant 0 : index
    %45 = vector.load %arg9[%c0_22, %c0_23] : memref<12x1xf32, #tpu.memory_space<vmem>>, vector<12x1xf32>
    tpu.vector_store %arg9[%c0_22, %c0_23], %44 {strides = array<i32>} : memref<12x1xf32, #tpu.memory_space<vmem>>, vector<12x1xf32>,
    return
  }
  func.func @transform_0(%arg0: i32) -> (i32, i32) {
    %c0_i32 = arith.constant 0 : i32
    %c0_i32_0 = arith.constant 0 : i32
    return %arg0, %c0_i32 : i32, i32
  }
  func.func @transform_1(%arg0: i32) -> (i32, i32) {
    %c0_i32 = arith.constant 0 : i32
    %c0_i32_0 = arith.constant 0 : i32
    %c0_i32_1 = arith.constant 0 : i32
    return %c0_i32, %c0_i32_0 : i32, i32
  }
  func.func @transform_2(%arg0: i32) -> (i32, i32) {
    %c0_i32 = arith.constant 0 : i32
    %c0_i32_0 = arith.constant 0 : i32
    %c0_i32_1 = arith.constant 0 : i32
    return %c0_i32, %c0_i32_0 : i32, i32
  }
  func.func @transform_3(%arg0: i32) -> (i32, i32) {
    %c0_i32 = arith.constant 0 : i32
    %c0_i32_0 = arith.constant 0 : i32
    %c0_i32_1 = arith.constant 0 : i32
    return %c0_i32, %c0_i32_0 : i32, i32
  }
  func.func @transform_4(%arg0: i32) -> (i32, i32) {
    %c0_i32 = arith.constant 0 : i32
    %c0_i32_0 = arith.constant 0 : i32
    %c0_i32_1 = arith.constant 0 : i32
    return %c0_i32, %c0_i32_0 : i32, i32
  }
  func.func @transform_5(%arg0: i32) -> (i32, i32) {
    %c0_i32 = arith.constant 0 : i32
    %c0_i32_0 = arith.constant 0 : i32
    return %arg0, %c0_i32 : i32, i32
  }
  func.func @transform_6(%arg0: i32) -> (i32, i32) {
    %c0_i32 = arith.constant 0 : i32
    %c0_i32_0 = arith.constant 0 : i32
    return %arg0, %c0_i32 : i32, i32
  }
  func.func @transform_7(%arg0: i32) -> (i32, i32) {
    %c0_i32 = arith.constant 0 : i32
    %c0_i32_0 = arith.constant 0 : i32
    return %arg0, %c0_i32 : i32, i32
  }
  func.func @transform_8(%arg0: i32) -> (i32, i32) {
    %c0_i32 = arith.constant 0 : i32
    %c0_i32_0 = arith.constant 0 : i32
    return %arg0, %c0_i32 : i32, i32
  }
}

</mosaic_0001>

<llo_original>
// kernel: tpu_custom_call.1
$region0: #{tpu_custom_call.1}
  #allocation0 [shape = 'u32[]', space=smem, size = 0x4, offset = 0x4, fixed_abs, tag = 'smem constant byte address 0x4 - core index']
  #allocation1 [shape = 'u32[144,128]{1,0:T(1,128)}', space=vmem, size = 0x12000, scoped, tag = 'internal scratch']
  %s0 = inlined_call_operand.vmem [shape: f32[12,32], index: 0, kind: input, shape index: {}]
  %s1 = inlined_call_operand.vmem [shape: f32[32,64], index: 1, kind: input, shape index: {}]
  %s2 = inlined_call_operand.vmem [shape: f32[1,64], index: 2, kind: input, shape index: {}]
  %s3 = inlined_call_operand.vmem [shape: f32[64,5], index: 3, kind: input, shape index: {}]
  %s4 = inlined_call_operand.vmem [shape: f32[1,5], index: 4, kind: input, shape index: {}]
  %s5 = inlined_call_operand.vmem [shape: s32[12,1], index: 5, kind: input, shape index: {}]
  %s6 = inlined_call_operand.vmem [shape: f32[12,5], index: 6, kind: output, shape index: {0}]
  %s7 = inlined_call_operand.vmem [shape: f32[12,5], index: 7, kind: output, shape index: {1}]
  %s8 = inlined_call_operand.vmem [shape: f32[12,1], index: 8, kind: output, shape index: {2}]
  %9 = xla_tuple %s6, %s7, %s8
  %s10 = sld [smem:[#allocation0]]
  $region50: #{tpu_custom_call.1} parent=0
    _
  %s12 = ssub.s32 1, %s10
  %s13 = scalar_select 0, %s12, %s10
  // Predicated region
  $region2: #{tpu_custom_call.1} parent=0 // pred_check
    _
  $region3: #{tpu_custom_call.1} parent=0 // pred_check_branch
    %15 = sbr.rel (0) target = $region5
  $region4: #{tpu_custom_call.1} parent=0 // pred_region
    _
  $region5: #{tpu_custom_call.1} parent=0 // pred_fallthru
    _
  // Predicated region
  $region6: #{tpu_custom_call.1} parent=0 // pred_check
    _
  $region7: #{tpu_custom_call.1} parent=0 // pred_check_branch
    %17 = sbr.rel (0) target = $region9
  $region8: #{tpu_custom_call.1} parent=0 // pred_region
    _
  $region9: #{tpu_custom_call.1} parent=0 // pred_fallthru
    _
  // Predicated region
  $region10: #{tpu_custom_call.1} parent=0 // pred_check
    _
  $region11: #{tpu_custom_call.1} parent=0 // pred_check_branch
    %19 = sbr.rel (0) target = $region13
  $region12: #{tpu_custom_call.1} parent=0 // pred_region
    _
  $region13: #{tpu_custom_call.1} parent=0 // pred_fallthru
    _
  // Predicated region
  $region14: #{tpu_custom_call.1} parent=0 // pred_check
    _
  $region15: #{tpu_custom_call.1} parent=0 // pred_check_branch
    %21 = sbr.rel (0) target = $region17
  $region16: #{tpu_custom_call.1} parent=0 // pred_region
    _
  $region17: #{tpu_custom_call.1} parent=0 // pred_fallthru
    _
  // Predicated region
  $region18: #{tpu_custom_call.1} parent=0 // pred_check
    _
  $region19: #{tpu_custom_call.1} parent=0 // pred_check_branch
    %23 = sbr.rel (0) target = $region21
  $region20: #{tpu_custom_call.1} parent=0 // pred_region
    _
  $region21: #{tpu_custom_call.1} parent=0 // pred_fallthru
    _
  // Predicated region
  $region22: #{tpu_custom_call.1} parent=0 // pred_check
    _
  $region23: #{tpu_custom_call.1} parent=0 // pred_check_branch
    %25 = sbr.rel (0) target = $region25
  $region24: #{tpu_custom_call.1} parent=0 // pred_region
    _
  $region25: #{tpu_custom_call.1} parent=0 // pred_fallthru
    _
  %v26 = vld [vmem:[%s0] sm:$0xff]
  %v27 = vld [vmem:[%s0 + $0x8] sm:$0xf]
  %v28 = vld [vmem:[%s1] sm:$0xff]
  %v29 = vld [vmem:[%s1 + $0x8] sm:$0xff]
  %v30 = vld [vmem:[%s1 + $0x10] sm:$0xff]
  %v31 = vld [vmem:[%s1 + $0x18] sm:$0xff]
  %v32 = vld [vmem:[%s2] sm:$0x1]
  %v33 = vld [vmem:[%s3] sm:$0xff]
  %v34 = vld [vmem:[%s3 + $0x8] sm:$0xff]
  %v35 = vld [vmem:[%s3 + $0x10] sm:$0xff]
  %v36 = vld [vmem:[%s3 + $0x18] sm:$0xff]
  %v37 = vld [vmem:[%s3 + $0x20] sm:$0xff]
  %v38 = vld [vmem:[%s3 + $0x28] sm:$0xff]
  %v39 = vld [vmem:[%s3 + $0x30] sm:$0xff]
  %v40 = vld [vmem:[%s3 + $0x38] sm:$0xff]
  %v41 = vld [vmem:[%s4] sm:$0x1]
  %v43 = vlaneseq
  %v44 = vshrl.u32 %v43, 7
  %v45 = vsub.s32 0, %v44
  %v46 = vrot.slane %v32, %v45
  %vm48 = vcmask 261120
  %v50 = vsel %vm48, %v26, 0
  %v53 = vsel %vm48, %v27, 0
  %55 = vmatprep.subr.mxu0 0.0
  %56 = vmatpush1.msra.mxu0 0.0
  %57 = vmatprep.subr.mxu0 0.0
  %58 = vmatpush1.msra.mxu0 0.0
  %59 = vmatprep.subr.mxu0 0.0
  %60 = vmatpush1.msra.mxu0 0.0
  %61 = vmatprep.subr.mxu0 0.0
  %62 = vmatpush1.msra.mxu0 0.0
  %63 = vmatprep.subr.mxu0 0.0
  %64 = vmatpush1.msra.mxu0 0.0
  %65 = vmatprep.subr.mxu0 0.0
  %66 = vmatpush1.msra.mxu0 0.0
  %67 = vmatprep.subr.mxu0 0.0
  %68 = vmatpush1.msra.mxu0 0.0
  %69 = vmatprep.subr.mxu0 0.0
  %70 = vmatpush1.msra.mxu0 0.0
  %71 = vmatprep.subr.mxu0 0.0
  %72 = vmatpush1.msra.mxu0 0.0
  %73 = vmatprep.subr.mxu0 0.0
  %74 = vmatpush1.msra.mxu0 0.0
  %75 = vmatprep.subr.mxu0 0.0
  %76 = vmatpush1.msra.mxu0 0.0
  %77 = vmatprep.subr.mxu0 0.0
  %78 = vmatpush1.msra.mxu0 0.0
  %79 = vmatprep.subr.mxu0 0.0
  %80 = vmatpush1.msra.mxu0 %v31
  %81 = vmatprep.subr.mxu0 0.0
  %82 = vmatpush1.msra.mxu0 %v30
  %83 = vmatprep.subr.mxu0 0.0
  %84 = vmatpush1.msra.mxu0 %v29
  %85 = vmatprep.subr.mxu0 0.0
  %86 = vmatpush1.msra.mxu0 %v28
  %87 = vmatprep.subr.mxu0 0.0
  %88 = vmatpush2.msra.mxu0 0.0
  %89 = vmatprep.subr.mxu0 0.0
  %90 = vmatpush2.msra.mxu0 0.0
  %91 = vmatprep.subr.mxu0 0.0
  %92 = vmatpush2.msra.mxu0 0.0
  %93 = vmatprep.subr.mxu0 0.0
  %94 = vmatpush2.msra.mxu0 0.0
  %95 = vmatprep.subr.mxu0 0.0
  %96 = vmatpush2.msra.mxu0 0.0
  %97 = vmatprep.subr.mxu0 0.0
  %98 = vmatpush2.msra.mxu0 0.0
  %99 = vmatprep.subr.mxu0 0.0
  %100 = vmatpush2.msra.mxu0 0.0
  %101 = vmatprep.subr.mxu0 0.0
  %102 = vmatpush2.msra.mxu0 0.0
  %103 = vmatprep.subr.mxu0 0.0
  %104 = vmatpush2.msra.mxu0 0.0
  %105 = vmatprep.subr.mxu0 0.0
  %106 = vmatpush2.msra.mxu0 0.0
  %107 = vmatprep.subr.mxu0 0.0
  %108 = vmatpush2.msra.mxu0 0.0
  %109 = vmatprep.subr.mxu0 0.0
  %110 = vmatpush2.msra.mxu0 0.0
  %111 = vmatprep.subr.mxu0 0.0
  %112 = vmatpush2.msra.mxu0 0.0
  %113 = vmatprep.subr.mxu0 0.0
  %114 = vmatpush2.msra.mxu0 0.0
  %115 = vmatprep.subr.mxu0 0.0
  %116 = vmatpush2.msra.mxu0 0.0
  %117 = vmatprep.subr.mxu0 0.0
  %118 = vmatpush2.msra.mxu0 0.0
  %119 = vmatprep.mubr.f32.mxu0 0.0
  %120 = vmatmul.mubr.f32.gmra.mxu0 %v50
  %v121 = vpop.f32.mrf.mxu0
  %v122 = vadd.f32 %v46, %v121
  %v123 = vpop.f32.mrf.mxu0
  %124 = vmatprep.mubr.f32.mxu0 0.0
  %125 = vmatmul.mubr.f32.gmra.mxu0 %v53
  %v126 = vpop.f32.mrf.mxu0
  %v127 = vadd.f32 %v46, %v126
  %v128 = vpop.f32.mrf.mxu0
  %129 = vdwg.mxu0
  %v130 = vmax.f32 %v122, 0.0
  %v131 = vmax.f32 %v127, 0.0
  %v133 = vlaneseq
  %v134 = vshrl.u32 %v133, 7
  %v135 = vsub.s32 0, %v134
  %v136 = vrot.slane %v41, %v135
  %vm138 = vcmask 523264
  %v140 = vsel %vm138, %v130, 0
  %v143 = vsel %vm138, %v131, 0
  %145 = vmatprep.subr.mxu0 0.0
  %146 = vmatpush1.msra.mxu0 0.0
  %147 = vmatprep.subr.mxu0 0.0
  %148 = vmatpush1.msra.mxu0 0.0
  %149 = vmatprep.subr.mxu0 0.0
  %150 = vmatpush1.msra.mxu0 0.0
  %151 = vmatprep.subr.mxu0 0.0
  %152 = vmatpush1.msra.mxu0 0.0
  %153 = vmatprep.subr.mxu0 0.0
  %154 = vmatpush1.msra.mxu0 0.0
  %155 = vmatprep.subr.mxu0 0.0
  %156 = vmatpush1.msra.mxu0 0.0
  %157 = vmatprep.subr.mxu0 0.0
  %158 = vmatpush1.msra.mxu0 0.0
  %159 = vmatprep.subr.mxu0 0.0
  %160 = vmatpush1.msra.mxu0 0.0
  %161 = vmatprep.subr.mxu0 0.0
  %162 = vmatpush1.msra.mxu0 %v40
  %163 = vmatprep.subr.mxu0 0.0
  %164 = vmatpush1.msra.mxu0 %v39
  %165 = vmatprep.subr.mxu0 0.0
  %166 = vmatpush1.msra.mxu0 %v38
  %167 = vmatprep.subr.mxu0 0.0
  %168 = vmatpush1.msra.mxu0 %v37
  %169 = vmatprep.subr.mxu0 0.0
  %170 = vmatpush1.msra.mxu0 %v36
  %171 = vmatprep.subr.mxu0 0.0
  %172 = vmatpush1.msra.mxu0 %v35
  %173 = vmatprep.subr.mxu0 0.0
  %174 = vmatpush1.msra.mxu0 %v34
  %175 = vmatprep.subr.mxu0 0.0
  %176 = vmatpush1.msra.mxu0 %v33
  %177 = vmatprep.subr.mxu0 0.0
  %178 = vmatpush2.msra.mxu0 0.0
  %179 = vmatprep.subr.mxu0 0.0
  %180 = vmatpush2.msra.mxu0 0.0
  %181 = vmatprep.subr.mxu0 0.0
  %182 = vmatpush2.msra.mxu0 0.0
  %183 = vmatprep.subr.mxu0 0.0
  %184 = vmatpush2.msra.mxu0 0.0
  %185 = vmatprep.subr.mxu0 0.0
  %186 = vmatpush2.msra.mxu0 0.0
  %187 = vmatprep.subr.mxu0 0.0
  %188 = vmatpush2.msra.mxu0 0.0
  %189 = vmatprep.subr.mxu0 0.0
  %190 = vmatpush2.msra.mxu0 0.0
  %191 = vmatprep.subr.mxu0 0.0
  %192 = vmatpush2.msra.mxu0 0.0
  %193 = vmatprep.subr.mxu0 0.0
  %194 = vmatpush2.msra.mxu0 0.0
  %195 = vmatprep.subr.mxu0 0.0
  %196 = vmatpush2.msra.mxu0 0.0
  %197 = vmatprep.subr.mxu0 0.0
  %198 = vmatpush2.msra.mxu0 0.0
  %199 = vmatprep.subr.mxu0 0.0
  %200 = vmatpush2.msra.mxu0 0.0
  %201 = vmatprep.subr.mxu0 0.0
  %202 = vmatpush2.msra.mxu0 0.0
  %203 = vmatprep.subr.mxu0 0.0
  %204 = vmatpush2.msra.mxu0 0.0
  %205 = vmatprep.subr.mxu0 0.0
  %206 = vmatpush2.msra.mxu0 0.0
  %207 = vmatprep.subr.mxu0 0.0
  %208 = vmatpush2.msra.mxu0 0.0
  %209 = vmatprep.mubr.f32.mxu0 0.0
  %210 = vmatmul.mubr.f32.gmra.mxu0 %v140
  %v211 = vpop.f32.mrf.mxu0
  %v212 = vadd.f32 %v136, %v211
  %v213 = vpop.f32.mrf.mxu0
  %214 = vmatprep.mubr.f32.mxu0 0.0
  %215 = vmatmul.mubr.f32.gmra.mxu0 %v143
  %v216 = vpop.f32.mrf.mxu0
  %v217 = vadd.f32 %v136, %v216
  %v218 = vpop.f32.mrf.mxu0
  %219 = vdwg.mxu0
  %vm220 = vcmask 39936
  %v221 = vsel %vm220, %v212, -inf
  %222 = vmax.xlane.f32.xlu0 %v221
  %v223 = vpop.xlane.xlu0 %222
  %vm224 = vcmask 35840
  %v225 = vsel %vm224, %v217, -inf
  %226 = vmax.xlane.f32.xlu0 %v225
  %v227 = vpop.xlane.xlu0 %226
  %v228 = vsub.f32 %v212, %v223
  %v229 = vsub.f32 %v217, %v227
  %v230 = vmul.f32 %v228, 1.442695
  %v231 = vpow.pop %v230
  %v232 = vmul.f32 %v229, 1.442695
  %v233 = vpow.pop %v232
  %v234 = vsel %vm220, %v231, 0.0
  %235 = vadd.xlane.f32.xlu0 %v234
  %v236 = vpop.xlane.xlu0 %235
  %v237 = vsel %vm224, %v233, 0.0
  %238 = vadd.xlane.f32.xlu0 %v237
  %v239 = vpop.xlane.xlu0 %238
  %v240 = vrcp.pop %v236
  %v241 = vrcp.pop %v239
  %v242 = vmul.f32 %v231, %v240
  %v243 = vmul.f32 %v233, %v241
  %244 = vst.msk [vmem:[%s6] sm:$0xff] %vm220, %v212
  %245 = vst.msk [vmem:[%s6 + $0x8] sm:$0xf] %vm224, %v217
  %246 = vst.msk [vmem:[%s7] sm:$0xff] %vm220, %v242
  %247 = vst.msk [vmem:[%s7 + $0x8] sm:$0xf] %vm224, %v243
  %v248 = vlog2.pop %v236
  %v249 = vmul.f32 %v248, 0.6931472
  %v250 = vlog2.pop %v239
  %v251 = vmul.f32 %v250, 0.6931472
  %v252 = vadd.f32 %v223, %v249
  %v253 = vadd.f32 %v227, %v251
  %v254 = vlaneseq
  %v255 = vand.u32 %v254, 127
  %v256 = vld [vmem:[%s5] sm:$0xff]
  %v257 = vld [vmem:[%s5 + $0x8] sm:$0xf]
  %258 = vset.pattern.permute.xlu0 0
  %259 = vperm.xlu0 %258, %v256
  %v260 = vpop.permute.xlu0 %259
  %261 = vset.pattern.permute.xlu0 0
  %262 = vperm.xlu0 %261, %v257
  %v263 = vpop.permute.xlu0 %262
  %vm264 = vcmp.eq.s32.totalorder %v255, %v260
  %vm265 = vcmp.eq.s32.totalorder %v255, %v263
  %v266 = vsel %vm264, 1, 0
  %v267 = vsel %vm265, 1, 0
  %v268 = vcvt.s32.f32 %v266
  %v269 = vcvt.s32.f32 %v267
  %v270 = vmul.f32 %v212, %v268
  %v271 = vmul.f32 %v217, %v269
  %v272 = vsel %vm220, %v270, 0.0
  %273 = vadd.xlane.f32.xlu0 %v272
  %v274 = vpop.xlane.xlu0 %273
  %v275 = vsel %vm224, %v271, 0.0
  %276 = vadd.xlane.f32.xlu0 %v275
  %v277 = vpop.xlane.xlu0 %276
  %v278 = vlaneseq
  %v279 = vshrl.u32 %v278, 7
  %v280 = vadd.s32 %v279, 8
  %s281 = smul.u32 0, 12
  %v282 = vstv %s281
  %v283 = vadd.s32 %v279, %v282
  %v284 = vadd.s32 %v280, %v282
  %vm285 = vcmp.lt.s32.totalorder %v283, 12
  %vm286 = vcmp.lt.s32.totalorder %v284, 12
  %v287 = vsub.f32 %v252, %v274
  %v288 = vsub.f32 %v253, %v277
  %v289 = vsel %vm285, %v287, 0.0
  %v290 = vsel %vm286, %v288, 0.0
  %vm291 = vcmask 7168
  %292 = vst.msk [vmem:[%s8] sm:$0xff] %vm291, %v289
  %vm293 = vcmask 3072
  %294 = vst.msk [vmem:[%s8 + $0x8] sm:$0xf] %vm293, %v290
  // Predicated region
  $region26: #{tpu_custom_call.1} parent=0 // pred_check
    _
  $region27: #{tpu_custom_call.1} parent=0 // pred_check_branch
    %296 = sbr.rel (0) target = $region29
  $region28: #{tpu_custom_call.1} parent=0 // pred_region
    _
  $region29: #{tpu_custom_call.1} parent=0 // pred_fallthru
    _
  // Predicated region
  $region30: #{tpu_custom_call.1} parent=0 // pred_check
    _
  $region31: #{tpu_custom_call.1} parent=0 // pred_check_branch
    %298 = sbr.rel (0) target = $region33
  $region32: #{tpu_custom_call.1} parent=0 // pred_region
    _
  $region33: #{tpu_custom_call.1} parent=0 // pred_fallthru
    _
  // Predicated region
  $region34: #{tpu_custom_call.1} parent=0 // pred_check
    _
  $region35: #{tpu_custom_call.1} parent=0 // pred_check_branch
    %300 = sbr.rel (0) target = $region37
  $region36: #{tpu_custom_call.1} parent=0 // pred_region
    _
  $region37: #{tpu_custom_call.1} parent=0 // pred_fallthru
    _
  // Predicated region
  $region38: #{tpu_custom_call.1} parent=0 // pred_check
    _
  $region39: #{tpu_custom_call.1} parent=0 // pred_check_branch
    %302 = sbr.rel (0) target = $region41
  $region40: #{tpu_custom_call.1} parent=0 // pred_region
    _
  $region41: #{tpu_custom_call.1} parent=0 // pred_fallthru
    _
  // Predicated region
  $region42: #{tpu_custom_call.1} parent=0 // pred_check
    _
  $region43: #{tpu_custom_call.1} parent=0 // pred_check_branch
    %304 = sbr.rel (0) target = $region45
  $region44: #{tpu_custom_call.1} parent=0 // pred_region
    _
  $region45: #{tpu_custom_call.1} parent=0 // pred_fallthru
    _
  // Predicated region
  $region46: #{tpu_custom_call.1} parent=0 // pred_check
    _
  $region47: #{tpu_custom_call.1} parent=0 // pred_check_branch
    %306 = sbr.rel (0) target = $region49
  $region48: #{tpu_custom_call.1} parent=0 // pred_region
    _
  $region49: #{tpu_custom_call.1} parent=0 // pred_fallthru
    _

</llo_original>
